<compile_context>
chip_gen: v7x
topology: tpu7x:2x2x1
jax: 0.10.0
libtpu: 0.0.40
codegen_flags: <defaults>
</compile_context>

<pallas_src>
import jax
import jax.numpy as jnp
from jax.experimental import pallas as pl
from jax.experimental.pallas import tpu as pltpu


def _round_up(v, m):
    return ((v + m - 1) // m) * m


def _cnn_kernel(x_ref, wc_ref, bc_ref, mask_ref, wl_ref, bl_ref, wo_ref, bo_ref,
                out_ref):
    # x_ref : (Bt*L, K*C) bf16 im2col slab (taps stacked along the contraction axis)
    # wc_ref: (K*C, Fp)   bf16 fused conv weights (3 filter banks in disjoint lanes)
    # mask  : (L, Fp)     f32 {0,1} pool-validity mask (zero for invalid positions
    #                     and for padded lanes; safe because it is applied post-ReLU)
    L = mask_ref.shape[0]
    Bt = x_ref.shape[0] // L

    # Fused conv for all three kernel sizes: ONE im2col matmul, f32 accumulation.
    acc = jnp.dot(x_ref[...], wc_ref[...], preferred_element_type=jnp.float32)
    acc = jnp.maximum(acc + bc_ref[...], 0.0)                         # bias + ReLU

    # Mask invalid conv positions, then max-pool over the sequence axis.
    acc = acc.reshape(Bt, L, -1) * mask_ref[...]                      # (Bt, L, Fp)
    flat = jnp.max(acc, axis=1)                                       # (Bt, Fp)

    # Fully-connected head (weights lane-padded to 128; pad lanes stay exactly 0).
    h = jnp.tanh(jnp.dot(flat.astype(wl_ref.dtype), wl_ref[...],
                         preferred_element_type=jnp.float32) + bl_ref[...])
    # TODO(synk): nn.Dropout reproduced in eval/inference mode (identity); no RNG mask.
    out = jnp.tanh(jnp.dot(h.astype(wo_ref.dtype), wo_ref[...],
                           preferred_element_type=jnp.float32) + bo_ref[...])
    out_ref[...] = out.astype(out_ref.dtype)


def _pick_block_b(batch, seq_len):
    # One fat block at small scale (single-TC chips, amortize per-step overhead);
    # otherwise multiple-of-8 blocks with >=256 matmul rows (Bt*L) each.
    if batch * seq_len <= 512:
        return batch
    bt = _round_up(max(1, 256 // seq_len), 8)
    return min(batch, bt)


def cnn_forward(tokens, params, *, max_len, emb_dim, block_b=None):
    """Pallas-backed forward pass. tokens: int32 (B, max_len)."""
    emb_table = params["embedding"]                  # (vocab+1, emb_dim)
    B = tokens.shape[0]
    n_filters = params["conv1_b"].shape[-1]
    hid = params["layer_w"].shape[-1]                # 2 * n_filters
    out_dim = params["out_w"].shape[-1]
    K = 5                                            # max kernel size (3,4,5 fused)
    C = emb_dim
    L = max_len

    Bt = _pick_block_b(B, L) if block_b is None else block_b
    Bp = _round_up(B, Bt)

    # ---- wrapper-side layout prep (all plain XLA; fuses with the gather) -------
    # TODO(synk): embedding gather stays in XLA; fusing it into the kernel only
    # pays off at real ConvMF scale (L~300, E~200, large B).
    embed = emb_table[tokens]                                        # (B, L, E)
    x = embed.reshape(B, C, L).astype(jnp.float32)                   # PyTorch .view
    x = jnp.swapaxes(x, 1, 2)                                        # (B, L, C) channels-last
    x = jnp.pad(x, ((0, Bp - B), (0, K - 1), (0, 0)))                # batch pad + seq pad
    # im2col: row t holds taps t..t+K-1, channels fastest within each tap.
    x2col = jnp.concatenate([x[:, k:k + L, :] for k in range(K)], axis=-1)
    x2col = x2col.reshape(Bp * L, K * C).astype(jnp.bfloat16)        # (Bp*L, K*C)

    # ---- lane-padded parameter packing (zero pads -> padded outputs are 0) -----
    F = n_filters
    Fp = _round_up(3 * F, 128)
    Hp = _round_up(hid, 128)
    Op = _round_up(out_dim, 128)
    wc = jnp.zeros((K, C, Fp), jnp.float32)
    wc = wc.at[:3, :, 0 * F:1 * F].set(params["conv1_w"])
    wc = wc.at[:4, :, 1 * F:2 * F].set(params["conv2_w"])
    wc = wc.at[:5, :, 2 * F:3 * F].set(params["conv3_w"])
    wc = wc.reshape(K * C, Fp).astype(jnp.bfloat16)                  # im2col weights
    bc = jnp.zeros((1, Fp), jnp.float32)
    bc = bc.at[:, 0 * F:1 * F].set(params["conv1_b"])
    bc = bc.at[:, 1 * F:2 * F].set(params["conv2_b"])
    bc = bc.at[:, 2 * F:3 * F].set(params["conv3_b"])
    wl = (jnp.zeros((Fp, Hp), jnp.float32)
          .at[:3 * F, :hid].set(params["layer_w"]).astype(jnp.bfloat16))
    bl = jnp.zeros((1, Hp), jnp.float32).at[:, :hid].set(params["layer_b"])
    wo = (jnp.zeros((Hp, Op), jnp.float32)
          .at[:hid, :out_dim].set(params["out_w"]).astype(jnp.bfloat16))
    bo = jnp.zeros((1, Op), jnp.float32).at[:, :out_dim].set(params["out_b"])

    # Pool-validity mask: lane column -> kernel size -> number of valid positions.
    pos = jnp.arange(L)[:, None]
    col = jnp.arange(Fp)[None, :]
    valid_len = jnp.where(col < F, L - 2,             # k=3 -> L-3+1 valid positions
                jnp.where(col < 2 * F, L - 3,         # k=4
                jnp.where(col < 3 * F, L - 4, 0)))    # k=5; pad lanes -> 0
    mask = (pos < valid_len).astype(jnp.float32)                      # (L, Fp)

    # ---- pallas_call -----------------------------------------------------------
    grid = (Bp // Bt,)
    grid_spec = pltpu.PrefetchScalarGridSpec(
        num_scalar_prefetch=0,
        grid=grid,
        in_specs=[
            pl.BlockSpec((Bt * L, K * C), lambda i: (i, 0)),   # im2col activations
            pl.BlockSpec((K * C, Fp), lambda i: (0, 0)),       # fused conv weights
            pl.BlockSpec((1, Fp), lambda i: (0, 0)),           # fused conv bias
            pl.BlockSpec((L, Fp), lambda i: (0, 0)),           # pool mask
            pl.BlockSpec((Fp, Hp), lambda i: (0, 0)),          # layer weight
            pl.BlockSpec((1, Hp), lambda i: (0, 0)),           # layer bias
            pl.BlockSpec((Hp, Op), lambda i: (0, 0)),          # output weight
            pl.BlockSpec((1, Op), lambda i: (0, 0)),           # output bias
        ],
        out_specs=pl.BlockSpec((Bt, Op), lambda i: (i, 0)),
    )

    out = pl.pallas_call(
        _cnn_kernel,
        out_shape=jax.ShapeDtypeStruct((Bp, Op), jnp.float32),
        grid_spec=grid_spec,
        compiler_params=pltpu.CompilerParams(
            dimension_semantics=("parallel",),
        ),
    )(x2col, wc, bc, mask, wl, bl, wo, bo)
    return out[:B, :out_dim]                                          # (B, out_dim)


def cnn_forward_ref(tokens, params, *, max_len, emb_dim):
    """Pure-JAX f32 reference (same math, independent formulation) for verification."""
    emb_table = params["embedding"]
    batch = tokens.shape[0]
    embed = emb_table[tokens].reshape(batch, emb_dim, max_len)        # (B, C, L)

    def conv_block(w, b, k_size):                                     # w: (K, C, F)
        l_out = max_len - k_size + 1
        cols = []
        for t in range(l_out):
            patch = embed[:, :, t:t + k_size]                         # (B, C, K)
            cols.append(jnp.einsum("bck,kcf->bf", patch, w))
        conv = jnp.stack(cols, axis=1) + b                            # (B, l_out, F)
        conv = jnp.maximum(conv, 0.0)
        return conv.max(axis=1)                                       # (B, F)

    p3 = conv_block(params["conv1_w"], params["conv1_b"], 3)
    p4 = conv_block(params["conv2_w"], params["conv2_b"], 4)
    p5 = conv_block(params["conv3_w"], params["conv3_b"], 5)
    flat = jnp.concatenate([p3, p4, p5], axis=1)
    h = jnp.tanh(flat @ params["layer_w"] + params["layer_b"])
    return jnp.tanh(h @ params["out_w"] + params["out_b"])


def init_params(key, vocab_size, emb_dim, n_filters, output_dim):
    ks = jax.random.split(key, 11)

    def nrm(k, shape, scale=0.1):
        return (scale * jax.random.normal(k, shape)).astype(jnp.float32)

    return {
        "embedding": nrm(ks[0], (vocab_size + 1, emb_dim)),
        # Conv1d weights stored kernel-ready as (K, C, F); PyTorch layout is (F, C, K).
        "conv1_w": nrm(ks[1], (3, emb_dim, n_filters)),
        "conv1_b": nrm(ks[2], (1, n_filters)),
        "conv2_w": nrm(ks[3], (4, emb_dim, n_filters)),
        "conv2_b": nrm(ks[4], (1, n_filters)),
        "conv3_w": nrm(ks[5], (5, emb_dim, n_filters)),
        "conv3_b": nrm(ks[6], (1, n_filters)),
        # Linear weights stored pre-transposed as (in, out); PyTorch is (out, in).
        "layer_w": nrm(ks[7], (3 * n_filters, 2 * n_filters)),
        "layer_b": nrm(ks[8], (1, 2 * n_filters)),
        "out_w": nrm(ks[9], (2 * n_filters, output_dim)),
        "out_b": nrm(ks[10], (1, output_dim)),
    }


if __name__ == "__main__":
    # Small shapes consistent with the module's forward.
    vocab_size, emb_dim, max_len = 50, 32, 16
    n_filters, output_dim, batch = 16, 8, 16

    key = jax.random.PRNGKey(0)
    k_params, k_tok = jax.random.split(key)
    params = init_params(k_params, vocab_size, emb_dim, n_filters, output_dim)
    tokens = jax.random.randint(k_tok, (batch, max_len), 0, vocab_size + 1,
                                dtype=jnp.int32)

    out = cnn_forward(tokens, params, max_len=max_len, emb_dim=emb_dim)
    out = jax.block_until_ready(out)

    ref = cnn_forward_ref(tokens, params, max_len=max_len, emb_dim=emb_dim)
    assert out.shape == (batch, output_dim), out.shape
    # bf16 matmul operands -> ~1e-3..1e-2 level differences vs. the f32 reference.
    assert jnp.allclose(out, ref, atol=3e-2, rtol=3e-2), (out, ref)
    print("KERNEL_OK")
</pallas_src>

<mosaic_0001>
module attributes {stable_mosaic.version = 11 : i64} {
  func.func @_cnn_kernel(%arg0: i32, %arg1: memref<256x160xbf16, #tpu.memory_space<vmem>>, %arg2: memref<160x128xbf16, #tpu.memory_space<vmem>>, %arg3: memref<1x128xf32, #tpu.memory_space<vmem>>, %arg4: memref<16x128xf32, #tpu.memory_space<vmem>>, %arg5: memref<128x128xbf16, #tpu.memory_space<vmem>>, %arg6: memref<1x128xf32, #tpu.memory_space<vmem>>, %arg7: memref<128x128xbf16, #tpu.memory_space<vmem>>, %arg8: memref<1x128xf32, #tpu.memory_space<vmem>>, %arg9: memref<16x128xf32, #tpu.memory_space<vmem>>) attributes {dimension_semantics = [#tpu.dimension_semantics<parallel>], iteration_bounds = array<i64: 1>, scalar_prefetch = 0 : i64, scratch_operands = 0 : i64, tpu.core_type = #tpu.core_type<tc>, window_params = [{transform_indices = @transform_0, window_bounds = array<i64: 256, 160>}, {pipeline_mode = #tpu.pipeline_mode<synchronous>, transform_indices = @transform_1, window_bounds = array<i64: 160, 128>}, {pipeline_mode = #tpu.pipeline_mode<synchronous>, transform_indices = @transform_2, window_bounds = array<i64: 1, 128>}, {pipeline_mode = #tpu.pipeline_mode<synchronous>, transform_indices = @transform_3, window_bounds = array<i64: 16, 128>}, {pipeline_mode = #tpu.pipeline_mode<synchronous>, transform_indices = @transform_4, window_bounds = array<i64: 128, 128>}, {pipeline_mode = #tpu.pipeline_mode<synchronous>, transform_indices = @transform_5, window_bounds = array<i64: 1, 128>}, {pipeline_mode = #tpu.pipeline_mode<synchronous>, transform_indices = @transform_6, window_bounds = array<i64: 128, 128>}, {pipeline_mode = #tpu.pipeline_mode<synchronous>, transform_indices = @transform_7, window_bounds = array<i64: 1, 128>}, {transform_indices = @transform_8, window_bounds = array<i64: 16, 128>}]} {
    %c0 = arith.constant 0 : index
    %c0_0 = arith.constant 0 : index
    %0 = vector.load %arg1[%c0, %c0_0] : memref<256x160xbf16, #tpu.memory_space<vmem>>, vector<256x160xbf16>
    %c0_1 = arith.constant 0 : index
    %c0_2 = arith.constant 0 : index
    %1 = vector.load %arg2[%c0_1, %c0_2] : memref<160x128xbf16, #tpu.memory_space<vmem>>, vector<160x128xbf16>
    %cst = arith.constant dense<0.000000e+00> : vector<256x128xf32>
    %2 = tpu.matmul %0, %1, %cst {dimension_numbers = #tpu.dot_dimension_numbers<[1], [0], [0], [1], [0, 0, 1, 1], [], []>} : vector<256x160xbf16>, vector<160x128xbf16>, vector<256x128xf32> -> vector<256x128xf32>
    %c0_3 = arith.constant 0 : index
    %c0_4 = arith.constant 0 : index
    %3 = vector.load %arg3[%c0_3, %c0_4] : memref<1x128xf32, #tpu.memory_space<vmem>>, vector<1x128xf32>
    %4 = vector.broadcast %3 : vector<1x128xf32> to vector<256x128xf32>
    %5 = arith.addf %2, %4 : vector<256x128xf32>
    %cst_5 = arith.constant 0.000000e+00 : f32
    %6 = vector.broadcast %cst_5 : f32 to vector<256x128xf32>
    %7 = arith.maximumf %5, %6 : vector<256x128xf32>
    %8 = vector.shape_cast %7 : vector<256x128xf32> to vector<16x16x128xf32>
    %c0_6 = arith.constant 0 : index
    %c0_7 = arith.constant 0 : index
    %9 = vector.load %arg4[%c0_6, %c0_7] : memref<16x128xf32, #tpu.memory_space<vmem>>, vector<16x128xf32>
    %10 = vector.shape_cast %9 : vector<16x128xf32> to vector<1x16x128xf32>
    %11 = vector.broadcast %10 : vector<1x16x128xf32> to vector<16x16x128xf32>
    %12 = arith.mulf %8, %11 : vector<16x16x128xf32>
    %cst_8 = arith.constant dense<0xFF800000> : vector<16x128xf32>
    %13 = vector.multi_reduction <maximumf>, %12, %cst_8 [1] : vector<16x16x128xf32> to vector<16x128xf32>
    %14 = arith.truncf %13 : vector<16x128xf32> to vector<16x128xbf16>
    %c0_9 = arith.constant 0 : index
    %c0_10 = arith.constant 0 : index
    %15 = vector.load %arg5[%c0_9, %c0_10] : memref<128x128xbf16, #tpu.memory_space<vmem>>, vector<128x128xbf16>
    %cst_11 = arith.constant dense<0.000000e+00> : vector<16x128xf32>
    %16 = tpu.matmul %14, %15, %cst_11 {dimension_numbers = #tpu.dot_dimension_numbers<[1], [0], [0], [1], [0, 0, 1, 1], [], []>} : vector<16x128xbf16>, vector<128x128xbf16>, vector<16x128xf32> -> vector<16x128xf32>
    %c0_12 = arith.constant 0 : index
    %c0_13 = arith.constant 0 : index
    %17 = vector.load %arg6[%c0_12, %c0_13] : memref<1x128xf32, #tpu.memory_space<vmem>>, vector<1x128xf32>
    %18 = vector.broadcast %17 : vector<1x128xf32> to vector<16x128xf32>
    %19 = arith.addf %16, %18 : vector<16x128xf32>
    %20 = math.tanh %19 : vector<16x128xf32>
    %21 = arith.truncf %20 : vector<16x128xf32> to vector<16x128xbf16>
    %c0_14 = arith.constant 0 : index
    %c0_15 = arith.constant 0 : index
    %22 = vector.load %arg7[%c0_14, %c0_15] : memref<128x128xbf16, #tpu.memory_space<vmem>>, vector<128x128xbf16>
    %cst_16 = arith.constant dense<0.000000e+00> : vector<16x128xf32>
    %23 = tpu.matmul %21, %22, %cst_16 {dimension_numbers = #tpu.dot_dimension_numbers<[1], [0], [0], [1], [0, 0, 1, 1], [], []>} : vector<16x128xbf16>, vector<128x128xbf16>, vector<16x128xf32> -> vector<16x128xf32>
    %c0_17 = arith.constant 0 : index
    %c0_18 = arith.constant 0 : index
    %24 = vector.load %arg8[%c0_17, %c0_18] : memref<1x128xf32, #tpu.memory_space<vmem>>, vector<1x128xf32>
    %25 = vector.broadcast %24 : vector<1x128xf32> to vector<16x128xf32>
    %26 = arith.addf %23, %25 : vector<16x128xf32>
    %27 = math.tanh %26 : vector<16x128xf32>
    %c0_19 = arith.constant 0 : index
    %c0_20 = arith.constant 0 : index
    %28 = vector.load %arg9[%c0_19, %c0_20] : memref<16x128xf32, #tpu.memory_space<vmem>>, vector<16x128xf32>
    tpu.vector_store %arg9[%c0_19, %c0_20], %27 {strides = array<i32>} : memref<16x128xf32, #tpu.memory_space<vmem>>, vector<16x128xf32>,
    return
  }
  func.func @transform_0(%arg0: i32) -> (i32, i32) {
    %c0_i32 = arith.constant 0 : i32
    %c0_i32_0 = arith.constant 0 : i32
    return %arg0, %c0_i32 : i32, i32
  }
  func.func @transform_1(%arg0: i32) -> (i32, i32) {
    %c0_i32 = arith.constant 0 : i32
    %c0_i32_0 = arith.constant 0 : i32
    %c0_i32_1 = arith.constant 0 : i32
    return %c0_i32, %c0_i32_0 : i32, i32
  }
  func.func @transform_2(%arg0: i32) -> (i32, i32) {
    %c0_i32 = arith.constant 0 : i32
    %c0_i32_0 = arith.constant 0 : i32
    %c0_i32_1 = arith.constant 0 : i32
    return %c0_i32, %c0_i32_0 : i32, i32
  }
  func.func @transform_3(%arg0: i32) -> (i32, i32) {
    %c0_i32 = arith.constant 0 : i32
    %c0_i32_0 = arith.constant 0 : i32
    %c0_i32_1 = arith.constant 0 : i32
    return %c0_i32, %c0_i32_0 : i32, i32
  }
  func.func @transform_4(%arg0: i32) -> (i32, i32) {
    %c0_i32 = arith.constant 0 : i32
    %c0_i32_0 = arith.constant 0 : i32
    %c0_i32_1 = arith.constant 0 : i32
    return %c0_i32, %c0_i32_0 : i32, i32
  }
  func.func @transform_5(%arg0: i32) -> (i32, i32) {
    %c0_i32 = arith.constant 0 : i32
    %c0_i32_0 = arith.constant 0 : i32
    %c0_i32_1 = arith.constant 0 : i32
    return %c0_i32, %c0_i32_0 : i32, i32
  }
  func.func @transform_6(%arg0: i32) -> (i32, i32) {
    %c0_i32 = arith.constant 0 : i32
    %c0_i32_0 = arith.constant 0 : i32
    %c0_i32_1 = arith.constant 0 : i32
    return %c0_i32, %c0_i32_0 : i32, i32
  }
  func.func @transform_7(%arg0: i32) -> (i32, i32) {
    %c0_i32 = arith.constant 0 : i32
    %c0_i32_0 = arith.constant 0 : i32
    %c0_i32_1 = arith.constant 0 : i32
    return %c0_i32, %c0_i32_0 : i32, i32
  }
  func.func @transform_8(%arg0: i32) -> (i32, i32) {
    %c0_i32 = arith.constant 0 : i32
    %c0_i32_0 = arith.constant 0 : i32
    return %arg0, %c0_i32 : i32, i32
  }
}

</mosaic_0001>

<llo_original>
// kernel: tpu_custom_call.1
$region0: #{tpu_custom_call.1}
  #allocation0 [shape = 'u32[]', space=smem, size = 0x4, offset = 0x4, fixed_abs, tag = 'smem constant byte address 0x4 - core index']
  #allocation1 [shape = 'u32[144,128]{1,0:T(1,128)}', space=vmem, size = 0x12000, scoped, tag = 'internal scratch']
  %s0 = inlined_call_operand.vmem [shape: bf16[256,160], index: 0, kind: input, shape index: {}]
  %s1 = inlined_call_operand.vmem [shape: bf16[160,128], index: 1, kind: input, shape index: {}]
  %s2 = inlined_call_operand.vmem [shape: f32[1,128], index: 2, kind: input, shape index: {}]
  %s3 = inlined_call_operand.vmem [shape: f32[16,128], index: 3, kind: input, shape index: {}]
  %s4 = inlined_call_operand.vmem [shape: bf16[128,128], index: 4, kind: input, shape index: {}]
  %s5 = inlined_call_operand.vmem [shape: f32[1,128], index: 5, kind: input, shape index: {}]
  %s6 = inlined_call_operand.vmem [shape: bf16[128,128], index: 6, kind: input, shape index: {}]
  %s7 = inlined_call_operand.vmem [shape: f32[1,128], index: 7, kind: input, shape index: {}]
  %s8 = inlined_call_operand.hbm [shape: f32[16,128], index: 8, kind: output, shape index: {}]
  %s9 = sld [smem:[#allocation0]]
  $region42: #{tpu_custom_call.1} parent=0
    _
  %s11 = ssub.s32 1, %s9
  %s12 = scalar_select 0, %s11, %s9
  $region1: #{tpu_custom_call.1} parent=0
    #allocation2 [shape = 'u8[8192]{0}', space=vmem, size = 0x2000, scoped, tag = 'output window, operand 0, single buffered']
    #allocation3 [shape = 's32[1]{0}', space=sflag, size = 0x4, scoped, tag = 'scoped memory for tpu_custom_call.1']
    %13 = vsyncpa [#allocation3], 0
    // Predicated region
    $region2: #{tpu_custom_call.1} parent=1 // pred_check
      _
    $region3: #{tpu_custom_call.1} parent=1 // pred_check_branch
      %15 = sbr.rel (0) target = $region5
    $region4: #{tpu_custom_call.1} parent=1 // pred_region
      _
    $region5: #{tpu_custom_call.1} parent=1 // pred_fallthru
      _
    // Predicated region
    $region6: #{tpu_custom_call.1} parent=1 // pred_check
      _
    $region7: #{tpu_custom_call.1} parent=1 // pred_check_branch
      %17 = sbr.rel (0) target = $region9
    $region8: #{tpu_custom_call.1} parent=1 // pred_region
      _
    $region9: #{tpu_custom_call.1} parent=1 // pred_fallthru
      _
    // Predicated region
    $region10: #{tpu_custom_call.1} parent=1 // pred_check
      _
    $region11: #{tpu_custom_call.1} parent=1 // pred_check_branch
      %19 = sbr.rel (0) target = $region13
    $region12: #{tpu_custom_call.1} parent=1 // pred_region
      _
    $region13: #{tpu_custom_call.1} parent=1 // pred_fallthru
      _
    // Predicated region
    $region14: #{tpu_custom_call.1} parent=1 // pred_check
      _
    $region15: #{tpu_custom_call.1} parent=1 // pred_check_branch
      %21 = sbr.rel (0) target = $region17
    $region16: #{tpu_custom_call.1} parent=1 // pred_region
      _
    $region17: #{tpu_custom_call.1} parent=1 // pred_fallthru
      _
    // Predicated region
    $region18: #{tpu_custom_call.1} parent=1 // pred_check
      _
    $region19: #{tpu_custom_call.1} parent=1 // pred_check_branch
      %23 = sbr.rel (0) target = $region21
    $region20: #{tpu_custom_call.1} parent=1 // pred_region
      _
    $region21: #{tpu_custom_call.1} parent=1 // pred_fallthru
      _
    // Predicated region
    $region22: #{tpu_custom_call.1} parent=1 // pred_check
      _
    $region23: #{tpu_custom_call.1} parent=1 // pred_check_branch
      %25 = sbr.rel (0) target = $region25
    $region24: #{tpu_custom_call.1} parent=1 // pred_region
      _
    $region25: #{tpu_custom_call.1} parent=1 // pred_fallthru
      _
    // Predicated region
    $region26: #{tpu_custom_call.1} parent=1 // pred_check
      _
    $region27: #{tpu_custom_call.1} parent=1 // pred_check_branch
      %27 = sbr.rel (0) target = $region29
    $region28: #{tpu_custom_call.1} parent=1 // pred_region
      _
    $region29: #{tpu_custom_call.1} parent=1 // pred_fallthru
      _
    // Predicated region
    $region30: #{tpu_custom_call.1} parent=1 // pred_check
      _
    $region31: #{tpu_custom_call.1} parent=1 // pred_check_branch
      %29 = sbr.rel (0) target = $region33
    $region32: #{tpu_custom_call.1} parent=1 // pred_region
      _
    $region33: #{tpu_custom_call.1} parent=1 // pred_fallthru
      _
    %v31 = vld [vmem:[%s0] sm:$0xff]
    %v32 = vld [vmem:[%s0 + $0x8] sm:$0xff]
    %v33 = vld [vmem:[%s0 + $0x10] sm:$0xff]
    %v34 = vld [vmem:[%s0 + $0x18] sm:$0xff]
    %v35 = vld [vmem:[%s0 + $0x20] sm:$0xff]
    %v36 = vld [vmem:[%s0 + $0x28] sm:$0xff]
    %v37 = vld [vmem:[%s0 + $0x30] sm:$0xff]
    %v38 = vld [vmem:[%s0 + $0x38] sm:$0xff]
    %v39 = vld [vmem:[%s0 + $0x40] sm:$0xff]
    %v40 = vld [vmem:[%s0 + $0x48] sm:$0xff]
    %v41 = vld [vmem:[%s0 + $0x50] sm:$0xff]
    %v42 = vld [vmem:[%s0 + $0x58] sm:$0xff]
    %v43 = vld [vmem:[%s0 + $0x60] sm:$0xff]
    %v44 = vld [vmem:[%s0 + $0x68] sm:$0xff]
    %v45 = vld [vmem:[%s0 + $0x70] sm:$0xff]
    %v46 = vld [vmem:[%s0 + $0x78] sm:$0xff]
    %v47 = vld [vmem:[%s0 + $0x80] sm:$0xff]
    %v48 = vld [vmem:[%s0 + $0x88] sm:$0xff]
    %v49 = vld [vmem:[%s0 + $0x90] sm:$0xff]
    %v50 = vld [vmem:[%s0 + $0x98] sm:$0xff]
    %v51 = vld [vmem:[%s0 + $0xa0] sm:$0xff]
    %v52 = vld [vmem:[%s0 + $0xa8] sm:$0xff]
    %v53 = vld [vmem:[%s0 + $0xb0] sm:$0xff]
    %v54 = vld [vmem:[%s0 + $0xb8] sm:$0xff]
    %v55 = vld [vmem:[%s0 + $0xc0] sm:$0xff]
    %v56 = vld [vmem:[%s0 + $0xc8] sm:$0xff]
    %v57 = vld [vmem:[%s0 + $0xd0] sm:$0xff]
    %v58 = vld [vmem:[%s0 + $0xd8] sm:$0xff]
    %v59 = vld [vmem:[%s0 + $0xe0] sm:$0xff]
    %v60 = vld [vmem:[%s0 + $0xe8] sm:$0xff]
    %v61 = vld [vmem:[%s0 + $0xf0] sm:$0xff]
    %v62 = vld [vmem:[%s0 + $0xf8] sm:$0xff]
    %v63 = vld [vmem:[%s1] sm:$0xf]
    %v64 = vld [vmem:[%s1 + $0x4] sm:$0xf]
    %v65 = vld [vmem:[%s1 + $0x8] sm:$0xf]
    %v66 = vld [vmem:[%s1 + $0xc] sm:$0xf]
    %v67 = vld [vmem:[%s1 + $0x10] sm:$0xf]
    %v68 = vld [vmem:[%s1 + $0x14] sm:$0xf]
    %v69 = vld [vmem:[%s1 + $0x18] sm:$0xf]
    %v70 = vld [vmem:[%s1 + $0x1c] sm:$0xf]
    %v71 = vld [vmem:[%s1 + $0x20] sm:$0xf]
    %v72 = vld [vmem:[%s1 + $0x24] sm:$0xf]
    %v73 = vld [vmem:[%s1 + $0x28] sm:$0xf]
    %v74 = vld [vmem:[%s1 + $0x2c] sm:$0xf]
    %v75 = vld [vmem:[%s1 + $0x30] sm:$0xf]
    %v76 = vld [vmem:[%s1 + $0x34] sm:$0xf]
    %v77 = vld [vmem:[%s1 + $0x38] sm:$0xf]
    %v78 = vld [vmem:[%s1 + $0x3c] sm:$0xf]
    %v79 = vld [vmem:[%s1 + $0x40] sm:$0xf]
    %v80 = vld [vmem:[%s1 + $0x44] sm:$0xf]
    %v81 = vld [vmem:[%s1 + $0x48] sm:$0xf]
    %v82 = vld [vmem:[%s1 + $0x4c] sm:$0xf]
    %v83 = vld [vmem:[%s2] sm:$0x1]
    %v85 = vlaneseq
    %v86 = vshrl.u32 %v85, 7
    %v87 = vsub.s32 0, %v86
    %v88 = vrot.slane %v83, %v87
    %v122 = vunpack.c.l.b16 %v31
    %v123 = vunpack.c.h.b16 %v31
    %v124 = vunpack.c.l.b16 %v32
    %v125 = vunpack.c.h.b16 %v32
    %v126 = vunpack.c.l.b16 %v33
    %v127 = vunpack.c.h.b16 %v33
    %v128 = vunpack.c.l.b16 %v34
    %v129 = vunpack.c.h.b16 %v34
    %v130 = vunpack.c.l.b16 %v35
    %v131 = vunpack.c.h.b16 %v35
    %v132 = vunpack.c.l.b16 %v36
    %v133 = vunpack.c.h.b16 %v36
    %v134 = vunpack.c.l.b16 %v37
    %v135 = vunpack.c.h.b16 %v37
    %v136 = vunpack.c.l.b16 %v38
    %v137 = vunpack.c.h.b16 %v38
    %v138 = vunpack.c.l.b16 %v39
    %v139 = vunpack.c.h.b16 %v39
    %v140 = vunpack.c.l.b16 %v40
    %v141 = vunpack.c.h.b16 %v40
    %v142 = vunpack.c.l.b16 %v41
    %v143 = vunpack.c.h.b16 %v41
    %v144 = vunpack.c.l.b16 %v42
    %v145 = vunpack.c.h.b16 %v42
    %v146 = vunpack.c.l.b16 %v43
    %v147 = vunpack.c.h.b16 %v43
    %v148 = vunpack.c.l.b16 %v44
    %v149 = vunpack.c.h.b16 %v44
    %v150 = vunpack.c.l.b16 %v45
    %v151 = vunpack.c.h.b16 %v45
    %v152 = vunpack.c.l.b16 %v46
    %v153 = vunpack.c.h.b16 %v46
    %v154 = vunpack.c.l.b16 %v47
    %v155 = vunpack.c.h.b16 %v47
    %v156 = vunpack.c.l.b16 %v48
    %v157 = vunpack.c.h.b16 %v48
    %v158 = vunpack.c.l.b16 %v49
    %v159 = vunpack.c.h.b16 %v49
    %v160 = vunpack.c.l.b16 %v50
    %v161 = vunpack.c.h.b16 %v50
    %v162 = vunpack.c.l.b16 %v51
    %v163 = vunpack.c.h.b16 %v51
    %v164 = vunpack.c.l.b16 %v52
    %v165 = vunpack.c.h.b16 %v52
    %v166 = vunpack.c.l.b16 %v53
    %v167 = vunpack.c.h.b16 %v53
    %v168 = vunpack.c.l.b16 %v54
    %v169 = vunpack.c.h.b16 %v54
    %v170 = vunpack.c.l.b16 %v55
    %v171 = vunpack.c.h.b16 %v55
    %v172 = vunpack.c.l.b16 %v56
    %v173 = vunpack.c.h.b16 %v56
    %v174 = vunpack.c.l.b16 %v57
    %v175 = vunpack.c.h.b16 %v57
    %v176 = vunpack.c.l.b16 %v58
    %v177 = vunpack.c.h.b16 %v58
    %v178 = vunpack.c.l.b16 %v59
    %v179 = vunpack.c.h.b16 %v59
    %v180 = vunpack.c.l.b16 %v60
    %v181 = vunpack.c.h.b16 %v60
    %v182 = vunpack.c.l.b16 %v61
    %v183 = vunpack.c.h.b16 %v61
    %v184 = vunpack.c.l.b16 %v62
    %v185 = vunpack.c.h.b16 %v62
    %v186 = vpack.c.b16 %v124, %v122
    %v187 = vpack.c.b16 %v125, %v123
    %v188 = vpack.c.b16 %v128, %v126
    %v189 = vpack.c.b16 %v129, %v127
    %v190 = vpack.c.b16 %v132, %v130
    %v191 = vpack.c.b16 %v133, %v131
    %v192 = vpack.c.b16 %v136, %v134
    %v193 = vpack.c.b16 %v137, %v135
    %v194 = vpack.c.b16 %v140, %v138
    %v195 = vpack.c.b16 %v141, %v139
    %v196 = vpack.c.b16 %v144, %v142
    %v197 = vpack.c.b16 %v145, %v143
    %v198 = vpack.c.b16 %v148, %v146
    %v199 = vpack.c.b16 %v149, %v147
    %v200 = vpack.c.b16 %v152, %v150
    %v201 = vpack.c.b16 %v153, %v151
    %v202 = vpack.c.b16 %v156, %v154
    %v203 = vpack.c.b16 %v157, %v155
    %v204 = vpack.c.b16 %v160, %v158
    %v205 = vpack.c.b16 %v161, %v159
    %v206 = vpack.c.b16 %v164, %v162
    %v207 = vpack.c.b16 %v165, %v163
    %v208 = vpack.c.b16 %v168, %v166
    %v209 = vpack.c.b16 %v169, %v167
    %v210 = vpack.c.b16 %v172, %v170
    %v211 = vpack.c.b16 %v173, %v171
    %v212 = vpack.c.b16 %v176, %v174
    %v213 = vpack.c.b16 %v177, %v175
    %v214 = vpack.c.b16 %v180, %v178
    %v215 = vpack.c.b16 %v181, %v179
    %v216 = vpack.c.b16 %v184, %v182
    %v217 = vpack.c.b16 %v185, %v183
    %v254 = vunpack.c.l.b16 %v63
    %v255 = vunpack.c.l.b16 %v64
    %v256 = vunpack.c.l.b16 %v65
    %v257 = vunpack.c.l.b16 %v66
    %v258 = vunpack.c.l.b16 %v67
    %v259 = vunpack.c.l.b16 %v68
    %v260 = vunpack.c.l.b16 %v69
    %v261 = vunpack.c.l.b16 %v70
    %v262 = vunpack.c.l.b16 %v71
    %v263 = vunpack.c.l.b16 %v72
    %v264 = vunpack.c.l.b16 %v73
    %v265 = vunpack.c.l.b16 %v74
    %v266 = vunpack.c.l.b16 %v75
    %v267 = vunpack.c.l.b16 %v76
    %v268 = vunpack.c.l.b16 %v77
    %v269 = vunpack.c.l.b16 %v78
    %v270 = vunpack.c.l.b16 %v79
    %v271 = vunpack.c.l.b16 %v80
    %v272 = vunpack.c.l.b16 %v81
    %v273 = vunpack.c.l.b16 %v82
    %v274 = vpack.c.b16 %v255, %v254
    %v275 = vpack.c.b16 %v257, %v256
    %v276 = vpack.c.b16 %v259, %v258
    %v277 = vpack.c.b16 %v261, %v260
    %v278 = vpack.c.b16 %v263, %v262
    %v279 = vpack.c.b16 %v265, %v264
    %v280 = vpack.c.b16 %v267, %v266
    %v281 = vpack.c.b16 %v269, %v268
    %v282 = vpack.c.b16 %v271, %v270
    %v283 = vpack.c.b16 %v273, %v272
    %vm294 = vcmask 261120
    %v296 = vsel %vm294, %v187, 0
    %v299 = vsel %vm294, %v189, 0
    %v302 = vsel %vm294, %v191, 0
    %v305 = vsel %vm294, %v193, 0
    %v308 = vsel %vm294, %v195, 0
    %v311 = vsel %vm294, %v197, 0
    %v314 = vsel %vm294, %v199, 0
    %v317 = vsel %vm294, %v201, 0
    %v320 = vsel %vm294, %v203, 0
    %v323 = vsel %vm294, %v205, 0
    %v326 = vsel %vm294, %v207, 0
    %v329 = vsel %vm294, %v209, 0
    %v332 = vsel %vm294, %v211, 0
    %v335 = vsel %vm294, %v213, 0
    %v338 = vsel %vm294, %v215, 0
    %v341 = vsel %vm294, %v217, 0
    %343 = vmatprep.subr.bf16.mxu0 0
    %344 = vmatpush1.bf16.msra.mxu0 %v274
    %345 = vmatprep.subr.bf16.mxu0 0
    %346 = vmatpush1.bf16.msra.mxu0 %v275
    %347 = vmatprep.subr.bf16.mxu0 0
    %348 = vmatpush1.bf16.msra.mxu0 %v276
    %349 = vmatprep.subr.bf16.mxu0 0
    %350 = vmatpush1.bf16.msra.mxu0 %v277
    %351 = vmatprep.subr.bf16.mxu0 0
    %352 = vmatpush1.bf16.msra.mxu0 %v278
    %353 = vmatprep.subr.bf16.mxu0 0
    %354 = vmatpush1.bf16.msra.mxu0 %v279
    %355 = vmatprep.subr.bf16.mxu0 0
    %356 = vmatpush1.bf16.msra.mxu0 %v280
    %357 = vmatprep.subr.bf16.mxu0 0
    %358 = vmatpush1.bf16.msra.mxu0 %v281
    %359 = vmatprep.subr.bf16.mxu0 0
    %360 = vmatpush1.bf16.msra.mxu0 %v282
    %361 = vmatprep.subr.bf16.mxu0 0
    %362 = vmatpush1.bf16.msra.mxu0 %v283
    %363 = vmatprep.subr.bf16.mxu0 0
    %364 = vmatpush1.bf16.msra.mxu0 0
    %365 = vmatprep.subr.bf16.mxu0 0
    %366 = vmatpush1.bf16.msra.mxu0 0
    %367 = vmatprep.subr.bf16.mxu0 0
    %368 = vmatpush1.bf16.msra.mxu0 0
    %369 = vmatprep.subr.bf16.mxu0 0
    %370 = vmatpush1.bf16.msra.mxu0 0
    %371 = vmatprep.subr.bf16.mxu0 0
    %372 = vmatpush1.bf16.msra.mxu0 0
    %373 = vmatprep.subr.bf16.mxu0 0
    %374 = vmatpush1.bf16.msra.mxu0 0
    %375 = vmatprep.mubr.bf16.mxu0 %v296
    %376 = vmatmul.mubr.bf16.gmra.mrb[0].mxu0 %v186
    %v377 = vpop.f32.mrb[0].mxu0
    %v378 = vadd.f32 %v88, %v377
    %v379 = vpop.f32.mrb[0].mxu0
    %v380 = vpop.f32.mrb[0].mxu0
    %v381 = vadd.f32 %v88, %v380
    %v382 = vpop.f32.mrb[0].mxu0
    %383 = vmatprep.mubr.bf16.mxu0 %v299
    %384 = vmatmul.mubr.bf16.gmra.mrb[0].mxu0 %v188
    %v385 = vpop.f32.mrb[0].mxu0
    %v386 = vadd.f32 %v88, %v385
    %v387 = vpop.f32.mrb[0].mxu0
    %v388 = vpop.f32.mrb[0].mxu0
    %v389 = vadd.f32 %v88, %v388
    %v390 = vpop.f32.mrb[0].mxu0
    %391 = vmatprep.mubr.bf16.mxu0 %v302
    %392 = vmatmul.mubr.bf16.gmra.mrb[0].mxu0 %v190
    %v393 = vpop.f32.mrb[0].mxu0
    %v394 = vadd.f32 %v88, %v393
    %v395 = vpop.f32.mrb[0].mxu0
    %v396 = vpop.f32.mrb[0].mxu0
    %v397 = vadd.f32 %v88, %v396
    %v398 = vpop.f32.mrb[0].mxu0
    %399 = vmatprep.mubr.bf16.mxu0 %v305
    %400 = vmatmul.mubr.bf16.gmra.mrb[0].mxu0 %v192
    %v401 = vpop.f32.mrb[0].mxu0
    %v402 = vadd.f32 %v88, %v401
    %v403 = vpop.f32.mrb[0].mxu0
    %v404 = vpop.f32.mrb[0].mxu0
    %v405 = vadd.f32 %v88, %v404
    %v406 = vpop.f32.mrb[0].mxu0
    %407 = vmatprep.mubr.bf16.mxu0 %v308
    %408 = vmatmul.mubr.bf16.gmra.mrb[0].mxu0 %v194
    %v409 = vpop.f32.mrb[0].mxu0
    %v410 = vadd.f32 %v88, %v409
    %v411 = vpop.f32.mrb[0].mxu0
    %v412 = vpop.f32.mrb[0].mxu0
    %v413 = vadd.f32 %v88, %v412
    %v414 = vpop.f32.mrb[0].mxu0
    %415 = vmatprep.mubr.bf16.mxu0 %v311
    %416 = vmatmul.mubr.bf16.gmra.mrb[0].mxu0 %v196
    %v417 = vpop.f32.mrb[0].mxu0
    %v418 = vadd.f32 %v88, %v417
    %v419 = vpop.f32.mrb[0].mxu0
    %v420 = vpop.f32.mrb[0].mxu0
    %v421 = vadd.f32 %v88, %v420
    %v422 = vpop.f32.mrb[0].mxu0
    %423 = vmatprep.mubr.bf16.mxu0 %v314
    %424 = vmatmul.mubr.bf16.gmra.mrb[0].mxu0 %v198
    %v425 = vpop.f32.mrb[0].mxu0
    %v426 = vadd.f32 %v88, %v425
    %v427 = vpop.f32.mrb[0].mxu0
    %v428 = vpop.f32.mrb[0].mxu0
    %v429 = vadd.f32 %v88, %v428
    %v430 = vpop.f32.mrb[0].mxu0
    %431 = vmatprep.mubr.bf16.mxu0 %v317
    %432 = vmatmul.mubr.bf16.gmra.mrb[0].mxu0 %v200
    %v433 = vpop.f32.mrb[0].mxu0
    %v434 = vadd.f32 %v88, %v433
    %v435 = vpop.f32.mrb[0].mxu0
    %v436 = vpop.f32.mrb[0].mxu0
    %v437 = vadd.f32 %v88, %v436
    %v438 = vpop.f32.mrb[0].mxu0
    %439 = vmatprep.mubr.bf16.mxu0 %v320
    %440 = vmatmul.mubr.bf16.gmra.mrb[0].mxu0 %v202
    %v441 = vpop.f32.mrb[0].mxu0
    %v442 = vadd.f32 %v88, %v441
    %v443 = vpop.f32.mrb[0].mxu0
    %v444 = vpop.f32.mrb[0].mxu0
    %v445 = vadd.f32 %v88, %v444
    %v446 = vpop.f32.mrb[0].mxu0
    %447 = vmatprep.mubr.bf16.mxu0 %v323
    %448 = vmatmul.mubr.bf16.gmra.mrb[0].mxu0 %v204
    %v449 = vpop.f32.mrb[0].mxu0
    %v450 = vadd.f32 %v88, %v449
    %v451 = vpop.f32.mrb[0].mxu0
    %v452 = vpop.f32.mrb[0].mxu0
    %v453 = vadd.f32 %v88, %v452
    %v454 = vpop.f32.mrb[0].mxu0
    %455 = vmatprep.mubr.bf16.mxu0 %v326
    %456 = vmatmul.mubr.bf16.gmra.mrb[0].mxu0 %v206
    %v457 = vpop.f32.mrb[0].mxu0
    %v458 = vadd.f32 %v88, %v457
    %v459 = vpop.f32.mrb[0].mxu0
    %v460 = vpop.f32.mrb[0].mxu0
    %v461 = vadd.f32 %v88, %v460
    %v462 = vpop.f32.mrb[0].mxu0
    %463 = vmatprep.mubr.bf16.mxu0 %v329
    %464 = vmatmul.mubr.bf16.gmra.mrb[0].mxu0 %v208
    %v465 = vpop.f32.mrb[0].mxu0
    %v466 = vadd.f32 %v88, %v465
    %v467 = vpop.f32.mrb[0].mxu0
    %v468 = vpop.f32.mrb[0].mxu0
    %v469 = vadd.f32 %v88, %v468
    %v470 = vpop.f32.mrb[0].mxu0
    %471 = vmatprep.mubr.bf16.mxu0 %v332
    %472 = vmatmul.mubr.bf16.gmra.mrb[0].mxu0 %v210
    %v473 = vpop.f32.mrb[0].mxu0
    %v474 = vadd.f32 %v88, %v473
    %v475 = vpop.f32.mrb[0].mxu0
    %v476 = vpop.f32.mrb[0].mxu0
    %v477 = vadd.f32 %v88, %v476
    %v478 = vpop.f32.mrb[0].mxu0
    %479 = vmatprep.mubr.bf16.mxu0 %v335
    %480 = vmatmul.mubr.bf16.gmra.mrb[0].mxu0 %v212
    %v481 = vpop.f32.mrb[0].mxu0
    %v482 = vadd.f32 %v88, %v481
    %v483 = vpop.f32.mrb[0].mxu0
    %v484 = vpop.f32.mrb[0].mxu0
    %v485 = vadd.f32 %v88, %v484
    %v486 = vpop.f32.mrb[0].mxu0
    %487 = vmatprep.mubr.bf16.mxu0 %v338
    %488 = vmatmul.mubr.bf16.gmra.mrb[0].mxu0 %v214
    %v489 = vpop.f32.mrb[0].mxu0
    %v490 = vadd.f32 %v88, %v489
    %v491 = vpop.f32.mrb[0].mxu0
    %v492 = vpop.f32.mrb[0].mxu0
    %v493 = vadd.f32 %v88, %v492
    %v494 = vpop.f32.mrb[0].mxu0
    %495 = vmatprep.mubr.bf16.mxu0 %v341
    %496 = vmatmul.mubr.bf16.gmra.mrb[0].mxu0 %v216
    %v497 = vpop.f32.mrb[0].mxu0
    %v498 = vadd.f32 %v88, %v497
    %v499 = vpop.f32.mrb[0].mxu0
    %v500 = vpop.f32.mrb[0].mxu0
    %v501 = vadd.f32 %v88, %v500
    %v502 = vpop.f32.mrb[0].mxu0
    %503 = vdwg.mxu0
    %v504 = vmax.f32 %v378, 0.0
    %v505 = vmax.f32 %v381, 0.0
    %v506 = vmax.f32 %v386, 0.0
    %v507 = vmax.f32 %v389, 0.0
    %v508 = vmax.f32 %v394, 0.0
    %v509 = vmax.f32 %v397, 0.0
    %v510 = vmax.f32 %v402, 0.0
    %v511 = vmax.f32 %v405, 0.0
    %v512 = vmax.f32 %v410, 0.0
    %v513 = vmax.f32 %v413, 0.0
    %v514 = vmax.f32 %v418, 0.0
    %v515 = vmax.f32 %v421, 0.0
    %v516 = vmax.f32 %v426, 0.0
    %v517 = vmax.f32 %v429, 0.0
    %v518 = vmax.f32 %v434, 0.0
    %v519 = vmax.f32 %v437, 0.0
    %v520 = vmax.f32 %v442, 0.0
    %v521 = vmax.f32 %v445, 0.0
    %v522 = vmax.f32 %v450, 0.0
    %v523 = vmax.f32 %v453, 0.0
    %v524 = vmax.f32 %v458, 0.0
    %v525 = vmax.f32 %v461, 0.0
    %v526 = vmax.f32 %v466, 0.0
    %v527 = vmax.f32 %v469, 0.0
    %v528 = vmax.f32 %v474, 0.0
    %v529 = vmax.f32 %v477, 0.0
    %v530 = vmax.f32 %v482, 0.0
    %v531 = vmax.f32 %v485, 0.0
    %v532 = vmax.f32 %v490, 0.0
    %v533 = vmax.f32 %v493, 0.0
    %v534 = vmax.f32 %v498, 0.0
    %v535 = vmax.f32 %v501, 0.0
    %v536 = vld [vmem:[%s3] sm:$0xff]
    %v537 = vld [vmem:[%s3 + $0x8] sm:$0xff]
    %v538 = vmul.f32 %v504, %v536
    %v539 = vmul.f32 %v505, %v537
    %v540 = vmul.f32 %v506, %v536
    %v541 = vmul.f32 %v507, %v537
    %v542 = vmul.f32 %v508, %v536
    %v543 = vmul.f32 %v509, %v537
    %v544 = vmul.f32 %v510, %v536
    %v545 = vmul.f32 %v511, %v537
    %v546 = vmul.f32 %v512, %v536
    %v547 = vmul.f32 %v513, %v537
    %v548 = vmul.f32 %v514, %v536
    %v549 = vmul.f32 %v515, %v537
    %v550 = vmul.f32 %v516, %v536
    %v551 = vmul.f32 %v517, %v537
    %v552 = vmul.f32 %v518, %v536
    %v553 = vmul.f32 %v519, %v537
    %v554 = vmul.f32 %v520, %v536
    %v555 = vmul.f32 %v521, %v537
    %v556 = vmul.f32 %v522, %v536
    %v557 = vmul.f32 %v523, %v537
    %v558 = vmul.f32 %v524, %v536
    %v559 = vmul.f32 %v525, %v537
    %v560 = vmul.f32 %v526, %v536
    %v561 = vmul.f32 %v527, %v537
    %v562 = vmul.f32 %v528, %v536
    %v563 = vmul.f32 %v529, %v537
    %v564 = vmul.f32 %v530, %v536
    %v565 = vmul.f32 %v531, %v537
    %v566 = vmul.f32 %v532, %v536
    %v567 = vmul.f32 %v533, %v537
    %v568 = vmul.f32 %v534, %v536
    %v569 = vmul.f32 %v535, %v537
    %v570 = vmax.f32 %v538, %v539
    %v571 = vrot.slane %v570, 4
    %v572 = vmax.f32 %v570, %v571
    %v573 = vrot.slane %v572, 2
    %v574 = vmax.f32 %v572, %v573
    %v575 = vrot.slane %v574, 1
    %v576 = vmax.f32 %v574, %v575
    %v577 = vmax.f32 %v540, %v541
    %v578 = vrot.slane %v577, 4
    %v579 = vmax.f32 %v577, %v578
    %v580 = vrot.slane %v579, 2
    %v581 = vmax.f32 %v579, %v580
    %v582 = vrot.slane %v581, 1
    %v583 = vmax.f32 %v581, %v582
    %v584 = vmax.f32 %v542, %v543
    %v585 = vrot.slane %v584, 4
    %v586 = vmax.f32 %v584, %v585
    %v587 = vrot.slane %v586, 2
    %v588 = vmax.f32 %v586, %v587
    %v589 = vrot.slane %v588, 1
    %v590 = vmax.f32 %v588, %v589
    %v591 = vmax.f32 %v544, %v545
    %v592 = vrot.slane %v591, 4
    %v593 = vmax.f32 %v591, %v592
    %v594 = vrot.slane %v593, 2
    %v595 = vmax.f32 %v593, %v594
    %v596 = vrot.slane %v595, 1
    %v597 = vmax.f32 %v595, %v596
    %v598 = vmax.f32 %v546, %v547
    %v599 = vrot.slane %v598, 4
    %v600 = vmax.f32 %v598, %v599
    %v601 = vrot.slane %v600, 2
    %v602 = vmax.f32 %v600, %v601
    %v603 = vrot.slane %v602, 1
    %v604 = vmax.f32 %v602, %v603
    %v605 = vmax.f32 %v548, %v549
    %v606 = vrot.slane %v605, 4
    %v607 = vmax.f32 %v605, %v606
    %v608 = vrot.slane %v607, 2
    %v609 = vmax.f32 %v607, %v608
    %v610 = vrot.slane %v609, 1
    %v611 = vmax.f32 %v609, %v610
    %v612 = vmax.f32 %v550, %v551
    %v613 = vrot.slane %v612, 4
    %v614 = vmax.f32 %v612, %v613
    %v615 = vrot.slane %v614, 2
    %v616 = vmax.f32 %v614, %v615
    %v617 = vrot.slane %v616, 1
    %v618 = vmax.f32 %v616, %v617
    %v619 = vmax.f32 %v552, %v553
    %v620 = vrot.slane %v619, 4
    %v621 = vmax.f32 %v619, %v620
    %v622 = vrot.slane %v621, 2
    %v623 = vmax.f32 %v621, %v622
    %v624 = vrot.slane %v623, 1
    %v625 = vmax.f32 %v623, %v624
    %v626 = vmax.f32 %v554, %v555
    %v627 = vrot.slane %v626, 4
    %v628 = vmax.f32 %v626, %v627
    %v629 = vrot.slane %v628, 2
    %v630 = vmax.f32 %v628, %v629
    %v631 = vrot.slane %v630, 1
    %v632 = vmax.f32 %v630, %v631
    %v633 = vmax.f32 %v556, %v557
    %v634 = vrot.slane %v633, 4
    %v635 = vmax.f32 %v633, %v634
    %v636 = vrot.slane %v635, 2
    %v637 = vmax.f32 %v635, %v636
    %v638 = vrot.slane %v637, 1
    %v639 = vmax.f32 %v637, %v638
    %v640 = vmax.f32 %v558, %v559
    %v641 = vrot.slane %v640, 4
    %v642 = vmax.f32 %v640, %v641
    %v643 = vrot.slane %v642, 2
    %v644 = vmax.f32 %v642, %v643
    %v645 = vrot.slane %v644, 1
    %v646 = vmax.f32 %v644, %v645
    %v647 = vmax.f32 %v560, %v561
    %v648 = vrot.slane %v647, 4
    %v649 = vmax.f32 %v647, %v648
    %v650 = vrot.slane %v649, 2
    %v651 = vmax.f32 %v649, %v650
    %v652 = vrot.slane %v651, 1
    %v653 = vmax.f32 %v651, %v652
    %v654 = vmax.f32 %v562, %v563
    %v655 = vrot.slane %v654, 4
    %v656 = vmax.f32 %v654, %v655
    %v657 = vrot.slane %v656, 2
    %v658 = vmax.f32 %v656, %v657
    %v659 = vrot.slane %v658, 1
    %v660 = vmax.f32 %v658, %v659
    %v661 = vmax.f32 %v564, %v565
    %v662 = vrot.slane %v661, 4
    %v663 = vmax.f32 %v661, %v662
    %v664 = vrot.slane %v663, 2
    %v665 = vmax.f32 %v663, %v664
    %v666 = vrot.slane %v665, 1
    %v667 = vmax.f32 %v665, %v666
    %v668 = vmax.f32 %v566, %v567
    %v669 = vrot.slane %v668, 4
    %v670 = vmax.f32 %v668, %v669
    %v671 = vrot.slane %v670, 2
    %v672 = vmax.f32 %v670, %v671
    %v673 = vrot.slane %v672, 1
    %v674 = vmax.f32 %v672, %v673
    %v675 = vmax.f32 %v568, %v569
    %v676 = vrot.slane %v675, 4
    %v677 = vmax.f32 %v675, %v676
    %v678 = vrot.slane %v677, 2
    %v679 = vmax.f32 %v677, %v678
    %v680 = vrot.slane %v679, 1
    %v681 = vmax.f32 %v679, %v680
    %v682 = vpack.c.bf16 %v576, %v576
    %v683 = vpack.c.bf16 %v583, %v583
    %v684 = vpack.c.bf16 %v590, %v590
    %v685 = vpack.c.bf16 %v597, %v597
    %v686 = vpack.c.bf16 %v604, %v604
    %v687 = vpack.c.bf16 %v611, %v611
    %v688 = vpack.c.bf16 %v618, %v618
    %v689 = vpack.c.bf16 %v625, %v625
    %v690 = vpack.c.bf16 %v632, %v632
    %v691 = vpack.c.bf16 %v639, %v639
    %v692 = vpack.c.bf16 %v646, %v646
    %v693 = vpack.c.bf16 %v653, %v653
    %v694 = vpack.c.bf16 %v660, %v660
    %v695 = vpack.c.bf16 %v667, %v667
    %v696 = vpack.c.bf16 %v674, %v674
    %v697 = vpack.c.bf16 %v681, %v681
    %v698 = vld [vmem:[%s4] sm:$0xf]
    %v699 = vld [vmem:[%s4 + $0x4] sm:$0xf]
    %v700 = vld [vmem:[%s4 + $0x8] sm:$0xf]
    %v701 = vld [vmem:[%s4 + $0xc] sm:$0xf]
    %v702 = vld [vmem:[%s4 + $0x10] sm:$0xf]
    %v703 = vld [vmem:[%s4 + $0x14] sm:$0xf]
    %v704 = vld [vmem:[%s4 + $0x18] sm:$0xf]
    %v705 = vld [vmem:[%s4 + $0x1c] sm:$0xf]
    %v706 = vld [vmem:[%s4 + $0x20] sm:$0xf]
    %v707 = vld [vmem:[%s4 + $0x24] sm:$0xf]
    %v708 = vld [vmem:[%s4 + $0x28] sm:$0xf]
    %v709 = vld [vmem:[%s4 + $0x2c] sm:$0xf]
    %v710 = vld [vmem:[%s4 + $0x30] sm:$0xf]
    %v711 = vld [vmem:[%s4 + $0x34] sm:$0xf]
    %v712 = vld [vmem:[%s4 + $0x38] sm:$0xf]
    %v713 = vld [vmem:[%s4 + $0x3c] sm:$0xf]
    %v714 = vld [vmem:[%s5] sm:$0x1]
    %v716 = vlaneseq
    %v717 = vshrl.u32 %v716, 7
    %v718 = vsub.s32 0, %v717
    %v719 = vrot.slane %v714, %v718
    %v737 = vunpack.c.l.b16 %v682
    %v738 = vunpack.c.l.b16 %v683
    %v739 = vunpack.c.l.b16 %v684
    %v740 = vunpack.c.l.b16 %v685
    %v741 = vunpack.c.l.b16 %v686
    %v742 = vunpack.c.l.b16 %v687
    %v743 = vunpack.c.l.b16 %v688
    %v744 = vunpack.c.l.b16 %v689
    %v745 = vunpack.c.l.b16 %v690
    %v746 = vunpack.c.l.b16 %v691
    %v747 = vunpack.c.l.b16 %v692
    %v748 = vunpack.c.l.b16 %v693
    %v749 = vunpack.c.l.b16 %v694
    %v750 = vunpack.c.l.b16 %v695
    %v751 = vunpack.c.l.b16 %v696
    %v752 = vunpack.c.l.b16 %v697
    %vm753 = vcmask 1041409
    %v754 = vsel %vm753, %v738, %v737
    %vm755 = vcmask 1042434
    %v756 = vsel %vm755, %v739, %v754
    %vm757 = vcmask 1043459
    %v758 = vsel %vm757, %v740, %v756
    %vm759 = vcmask 1044484
    %v760 = vsel %vm759, %v741, %v758
    %vm761 = vcmask 1045509
    %v762 = vsel %vm761, %v742, %v760
    %vm763 = vcmask 1046534
    %v764 = vsel %vm763, %v743, %v762
    %vm765 = vcmask 1047559
    %v766 = vsel %vm765, %v744, %v764
    %v767 = vsel %vm753, %v746, %v745
    %v768 = vsel %vm755, %v747, %v767
    %v769 = vsel %vm757, %v748, %v768
    %v770 = vsel %vm759, %v749, %v769
    %v771 = vsel %vm761, %v750, %v770
    %v772 = vsel %vm763, %v751, %v771
    %v773 = vsel %vm765, %v752, %v772
    %v774 = vpack.c.b16 %v773, %v766
    %v792 = vunpack.c.l.b16 %v698
    %v793 = vunpack.c.l.b16 %v699
    %v794 = vunpack.c.l.b16 %v700
    %v795 = vunpack.c.l.b16 %v701
    %v796 = vunpack.c.l.b16 %v702
    %v797 = vunpack.c.l.b16 %v703
    %v798 = vunpack.c.l.b16 %v704
    %v799 = vunpack.c.l.b16 %v705
    %v800 = vunpack.c.l.b16 %v706
    %v801 = vunpack.c.l.b16 %v707
    %v802 = vunpack.c.l.b16 %v708
    %v803 = vunpack.c.l.b16 %v709
    %v804 = vunpack.c.l.b16 %v710
    %v805 = vunpack.c.l.b16 %v711
    %v806 = vunpack.c.l.b16 %v712
    %v807 = vunpack.c.l.b16 %v713
    %v808 = vpack.c.b16 %v793, %v792
    %v809 = vpack.c.b16 %v795, %v794
    %v810 = vpack.c.b16 %v797, %v796
    %v811 = vpack.c.b16 %v799, %v798
    %v812 = vpack.c.b16 %v801, %v800
    %v813 = vpack.c.b16 %v803, %v802
    %v814 = vpack.c.b16 %v805, %v804
    %v815 = vpack.c.b16 %v807, %v806
    %824 = vmatprep.subr.bf16.mxu0 0
    %825 = vmatpush1.bf16.msra.mxu0 %v808
    %826 = vmatprep.subr.bf16.mxu0 0
    %827 = vmatpush1.bf16.msra.mxu0 %v809
    %828 = vmatprep.subr.bf16.mxu0 0
    %829 = vmatpush1.bf16.msra.mxu0 %v810
    %830 = vmatprep.subr.bf16.mxu0 0
    %831 = vmatpush1.bf16.msra.mxu0 %v811
    %832 = vmatprep.subr.bf16.mxu0 0
    %833 = vmatpush1.bf16.msra.mxu0 %v812
    %834 = vmatprep.subr.bf16.mxu0 0
    %835 = vmatpush1.bf16.msra.mxu0 %v813
    %836 = vmatprep.subr.bf16.mxu0 0
    %837 = vmatpush1.bf16.msra.mxu0 %v814
    %838 = vmatprep.subr.bf16.mxu0 0
    %839 = vmatpush1.bf16.msra.mxu0 %v815
    %840 = vmatprep.subr.bf16.mxu0 0
    %841 = vmatpush1.bf16.msra.mxu0 0
    %842 = vmatprep.subr.bf16.mxu0 0
    %843 = vmatpush1.bf16.msra.mxu0 0
    %844 = vmatprep.subr.bf16.mxu0 0
    %845 = vmatpush1.bf16.msra.mxu0 0
    %846 = vmatprep.subr.bf16.mxu0 0
    %847 = vmatpush1.bf16.msra.mxu0 0
    %848 = vmatprep.subr.bf16.mxu0 0
    %849 = vmatpush1.bf16.msra.mxu0 0
    %850 = vmatprep.subr.bf16.mxu0 0
    %851 = vmatpush1.bf16.msra.mxu0 0
    %852 = vmatprep.subr.bf16.mxu0 0
    %853 = vmatpush1.bf16.msra.mxu0 0
    %854 = vmatprep.subr.bf16.mxu0 0
    %855 = vmatpush1.bf16.msra.mxu0 0
    %856 = vmatprep.mubr.bf16.mxu0 0
    %857 = vmatmul.mubr.bf16.gmra.mrb[0].mxu0 %v774
    %v858 = vpop.f32.mrb[0].mxu0
    %v859 = vadd.f32 %v719, %v858
    %v860 = vpop.f32.mrb[0].mxu0
    %v861 = vpop.f32.mrb[0].mxu0
    %v862 = vadd.f32 %v719, %v861
    %v863 = vpop.f32.mrb[0].mxu0
    %864 = vdwg.mxu0
    %v865 = vtanh.pop %v859
    %v866 = vtanh.pop %v862
    %v867 = vpack.c.bf16 %v866, %v865
    %v868 = vld [vmem:[%s6] sm:$0xf]
    %v869 = vld [vmem:[%s6 + $0x4] sm:$0xf]
    %v870 = vld [vmem:[%s6 + $0x8] sm:$0xf]
    %v871 = vld [vmem:[%s6 + $0xc] sm:$0xf]
    %v872 = vld [vmem:[%s6 + $0x10] sm:$0xf]
    %v873 = vld [vmem:[%s6 + $0x14] sm:$0xf]
    %v874 = vld [vmem:[%s6 + $0x18] sm:$0xf]
    %v875 = vld [vmem:[%s6 + $0x1c] sm:$0xf]
    %v876 = vld [vmem:[%s6 + $0x20] sm:$0xf]
    %v877 = vld [vmem:[%s6 + $0x24] sm:$0xf]
    %v878 = vld [vmem:[%s6 + $0x28] sm:$0xf]
    %v879 = vld [vmem:[%s6 + $0x2c] sm:$0xf]
    %v880 = vld [vmem:[%s6 + $0x30] sm:$0xf]
    %v881 = vld [vmem:[%s6 + $0x34] sm:$0xf]
    %v882 = vld [vmem:[%s6 + $0x38] sm:$0xf]
    %v883 = vld [vmem:[%s6 + $0x3c] sm:$0xf]
    %v884 = vld [vmem:[%s7] sm:$0x1]
    %v886 = vlaneseq
    %v887 = vshrl.u32 %v886, 7
    %v888 = vsub.s32 0, %v887
    %v889 = vrot.slane %v884, %v888
    %v907 = vunpack.c.l.b16 %v868
    %v908 = vunpack.c.l.b16 %v869
    %v909 = vunpack.c.l.b16 %v870
    %v910 = vunpack.c.l.b16 %v871
    %v911 = vunpack.c.l.b16 %v872
    %v912 = vunpack.c.l.b16 %v873
    %v913 = vunpack.c.l.b16 %v874
    %v914 = vunpack.c.l.b16 %v875
    %v915 = vunpack.c.l.b16 %v876
    %v916 = vunpack.c.l.b16 %v877
    %v917 = vunpack.c.l.b16 %v878
    %v918 = vunpack.c.l.b16 %v879
    %v919 = vunpack.c.l.b16 %v880
    %v920 = vunpack.c.l.b16 %v881
    %v921 = vunpack.c.l.b16 %v882
    %v922 = vunpack.c.l.b16 %v883
    %v923 = vpack.c.b16 %v908, %v907
    %v924 = vpack.c.b16 %v910, %v909
    %v925 = vpack.c.b16 %v912, %v911
    %v926 = vpack.c.b16 %v914, %v913
    %v927 = vpack.c.b16 %v916, %v915
    %v928 = vpack.c.b16 %v918, %v917
    %v929 = vpack.c.b16 %v920, %v919
    %v930 = vpack.c.b16 %v922, %v921
    %939 = vmatprep.subr.bf16.mxu0 0
    %940 = vmatpush1.bf16.msra.mxu0 %v923
    %941 = vmatprep.subr.bf16.mxu0 0
    %942 = vmatpush1.bf16.msra.mxu0 %v924
    %943 = vmatprep.subr.bf16.mxu0 0
    %944 = vmatpush1.bf16.msra.mxu0 %v925
    %945 = vmatprep.subr.bf16.mxu0 0
    %946 = vmatpush1.bf16.msra.mxu0 %v926
    %947 = vmatprep.subr.bf16.mxu0 0
    %948 = vmatpush1.bf16.msra.mxu0 %v927
    %949 = vmatprep.subr.bf16.mxu0 0
    %950 = vmatpush1.bf16.msra.mxu0 %v928
    %951 = vmatprep.subr.bf16.mxu0 0
    %952 = vmatpush1.bf16.msra.mxu0 %v929
    %953 = vmatprep.subr.bf16.mxu0 0
    %954 = vmatpush1.bf16.msra.mxu0 %v930
    %955 = vmatprep.subr.bf16.mxu0 0
    %956 = vmatpush1.bf16.msra.mxu0 0
    %957 = vmatprep.subr.bf16.mxu0 0
    %958 = vmatpush1.bf16.msra.mxu0 0
    %959 = vmatprep.subr.bf16.mxu0 0
    %960 = vmatpush1.bf16.msra.mxu0 0
    %961 = vmatprep.subr.bf16.mxu0 0
    %962 = vmatpush1.bf16.msra.mxu0 0
    %963 = vmatprep.subr.bf16.mxu0 0
    %964 = vmatpush1.bf16.msra.mxu0 0
    %965 = vmatprep.subr.bf16.mxu0 0
    %966 = vmatpush1.bf16.msra.mxu0 0
    %967 = vmatprep.subr.bf16.mxu0 0
    %968 = vmatpush1.bf16.msra.mxu0 0
    %969 = vmatprep.subr.bf16.mxu0 0
    %970 = vmatpush1.bf16.msra.mxu0 0
    %971 = vmatprep.mubr.bf16.mxu0 0
    %972 = vmatmul.mubr.bf16.gmra.mrb[0].mxu0 %v867
    %v973 = vpop.f32.mrb[0].mxu0
    %v974 = vadd.f32 %v889, %v973
    %v975 = vpop.f32.mrb[0].mxu0
    %v976 = vpop.f32.mrb[0].mxu0
    %v977 = vadd.f32 %v889, %v976
    %v978 = vpop.f32.mrb[0].mxu0
    %979 = vdwg.mxu0
    %v980 = vtanh.pop %v974
    %v981 = vtanh.pop %v977
    %982 = vst [vmem:[#allocation2] sm:$0xff] %v980
    %983 = vst [vmem:[#allocation2 + $0x8] sm:$0xff] %v981
    // Predicated region
    $region34: #{tpu_custom_call.1} parent=1 // pred_check
      _
    $region35: #{tpu_custom_call.1} parent=1 // pred_check_branch
      %985 = sbr.rel (0) target = $region37
    $region36: #{tpu_custom_call.1} parent=1 // pred_region
      %s987 = ssub.s32 256, 256
      %988 = vsyncadd [#allocation3], %s987
      %s989 = sshll.u32 [#allocation2], 4
      %s990 = int_to_ptr.vmem [resolvable:$true] %s989
      %995 = dma.vmem_to_hbm [thread:$0]  %s990, 256, %s8, [#allocation3], 128, 128, 8
    $region37: #{tpu_custom_call.1} parent=1 // pred_fallthru
      _
    // Predicated region
    $region38: #{tpu_custom_call.1} parent=1 // pred_check
      _
    $region39: #{tpu_custom_call.1} parent=1 // pred_check_branch
      %997 = sbr.rel (0) target = $region41
    $region40: #{tpu_custom_call.1} parent=1 // pred_region
      %998 = dma.done [#allocation3], 256
    $region41: #{tpu_custom_call.1} parent=1 // pred_fallthru
      _
    %999 = vsyncpa [#allocation3], 1

</llo_original>
